<compile_context>
chip_gen: v5e
topology: v5e:2x2
jax: 0.10.0
libtpu: 0.0.40
codegen_flags: <defaults>
</compile_context>

<pallas_src>
import functools

import jax
import jax.numpy as jnp
from jax import lax
from jax.experimental import pallas as pl
from jax.experimental.pallas import tpu as pltpu

LANES = 128
MAX_BLOCK_ROWS = 2048  # 2048x128 f32 block = 1 MiB; 2 inputs x 2 bufs = 4 MiB VMEM.


def _dice_partials_kernel(p_ref, l_ref, out_ref, *, apply_sigmoid, n_valid,
                          block_rows, steps_per_split, needs_mask):
    s = pl.program_id(0)  # split axis ("parallel": dual-TC on v7x)
    j = pl.program_id(1)  # sequential steps within a split ("arbitrary")

    # out_ref block is resident across the j axis -> accumulate directly into it.
    @pl.when(j == 0)
    def _():
        out_ref[...] = jnp.zeros_like(out_ref)

    p = p_ref[...].astype(jnp.float32)
    if apply_sigmoid:
        p = jax.nn.sigmoid(p)
    lbl = l_ref[...].astype(jnp.float32)

    if needs_mask:
        # Global element index of each position in this block; zero the tail
        # (covers host zero-pad, ragged last block, and clamped overflow steps).
        blk = s * steps_per_split + j  # UNclamped logical block index
        base = blk * (block_rows * LANES)
        row = lax.broadcasted_iota(jnp.int32, (block_rows, LANES), 0)
        lane = lax.broadcasted_iota(jnp.int32, (block_rows, LANES), 1)
        mask = (base + row * LANES + lane) < n_valid
        p = jnp.where(mask, p, 0.0)
        lbl = jnp.where(mask, lbl, 0.0)

    def fold(x):
        # (block_rows, 128) -> (8, 128): tile-aligned reshape + VALU adds only.
        return jnp.sum(x.reshape(block_rows // 8, 8, LANES), axis=0)

    out_ref[0, 0] += fold(p * lbl)   # intersection partial
    out_ref[0, 1] += fold(p)         # sum(preds) partial
    out_ref[0, 2] += fold(lbl)       # sum(labels) partial


def dice_loss(preds, labels, smooth=1.0):
    apply_sigmoid = (preds.ndim == 4)

    p_flat = preds.reshape(-1)
    l_flat = labels.reshape(-1)
    n = p_flat.shape[0]

    # Sublane quantum for the narrowest input dtype: 8 rows (f32), 16 (bf16), 32 (8-bit).
    min_itemsize = min(jnp.dtype(preds.dtype).itemsize,
                       jnp.dtype(labels.dtype).itemsize, 4)
    row_quantum = 8 * (4 // min_itemsize)
    chunk = row_quantum * LANES

    n_pad = ((n + chunk - 1) // chunk) * chunk
    if n_pad != n:
        # Rare ragged case only; pad value is irrelevant (masked in-kernel).
        p_flat = jnp.pad(p_flat, (0, n_pad - n))
        l_flat = jnp.pad(l_flat, (0, n_pad - n))

    rows = n_pad // LANES
    p2 = p_flat.reshape(rows, LANES)
    l2 = l_flat.reshape(rows, LANES)

    block_rows = min(MAX_BLOCK_ROWS, rows)
    total_blocks = pl.cdiv(rows, block_rows)
    n_splits = 2 if total_blocks >= 2 else 1      # use both TCs on v7x
    steps_per_split = pl.cdiv(total_blocks, n_splits)

    needs_mask = (
        n_pad != n
        or total_blocks * block_rows != rows
        or n_splits * steps_per_split != total_blocks
    )

    last_block = total_blocks - 1

    def in_index(s, j):
        blk = s * steps_per_split + j
        # Clamp overflow steps to a valid block; their contribution is masked to 0.
        return (jnp.minimum(blk, last_block), 0)

    kernel = functools.partial(
        _dice_partials_kernel,
        apply_sigmoid=apply_sigmoid,
        n_valid=n,
        block_rows=block_rows,
        steps_per_split=steps_per_split,
        needs_mask=needs_mask,
    )

    partials = pl.pallas_call(
        kernel,
        out_shape=jax.ShapeDtypeStruct((n_splits, 3, 8, LANES), jnp.float32),
        grid_spec=pltpu.PrefetchScalarGridSpec(
            num_scalar_prefetch=0,
            grid=(n_splits, steps_per_split),
            in_specs=[
                pl.BlockSpec((block_rows, LANES), in_index),
                pl.BlockSpec((block_rows, LANES), in_index),
            ],
            out_specs=pl.BlockSpec((1, 3, 8, LANES), lambda s, j: (s, 0, 0, 0)),
        ),
        compiler_params=pltpu.CompilerParams(
            dimension_semantics=("parallel", "arbitrary"),
        ),
    )(p2, l2)

    smooth = jnp.float32(smooth)
    inter = partials[:, 0].sum()
    psum = partials[:, 1].sum()
    lsum = partials[:, 2].sum()
    dice = (2.0 * inter + smooth) / (psum + lsum + smooth)
    return 1.0 - dice


def dice_loss_ref(preds, labels, smooth=1.0):
    # Pure-JAX reference matching the PyTorch module (math done in f32).
    preds = preds.astype(jnp.float32)
    if preds.ndim == 4:
        preds = jax.nn.sigmoid(preds)
    p = preds.reshape(-1)
    l = labels.reshape(-1).astype(jnp.float32)
    inter = jnp.sum(p * l)
    dice = (2.0 * inter + smooth) / (jnp.sum(p) + jnp.sum(l) + smooth)
    return 1.0 - dice


if __name__ == "__main__":
    key = jax.random.PRNGKey(0)
    k1, k2, k3, k4, k5, k6 = jax.random.split(key, 6)

    # Primary: NCHW logits (sigmoid path), f32, fully aligned (no pad, no mask).
    preds = jax.random.normal(k1, (2, 4, 16, 16), dtype=jnp.float32)
    labels = (jax.random.uniform(k2, (2, 4, 16, 16)) > 0.5).astype(jnp.float32)
    loss = dice_loss(preds, labels, smooth=1.0)
    jax.block_until_ready(loss)
    ref = dice_loss_ref(preds, labels, smooth=1.0)
    assert jnp.allclose(loss, ref, atol=1e-5, rtol=1e-5), (loss, ref)

    # bf16 logits stream straight into the kernel (halved HBM read traffic).
    loss_bf = dice_loss(preds.astype(jnp.bfloat16), labels, smooth=1.0)
    ref_bf = dice_loss_ref(preds.astype(jnp.bfloat16), labels, smooth=1.0)
    assert jnp.allclose(loss_bf, ref_bf, atol=1e-5, rtol=1e-5), (loss_bf, ref_bf)

    # Non-4D (no sigmoid) + ragged element count -> in-kernel tail masking.
    p3 = jax.random.uniform(k3, (3, 5, 7), dtype=jnp.float32)
    l3 = (jax.random.uniform(k4, (3, 5, 7)) > 0.5).astype(jnp.float32)
    loss3 = dice_loss(p3, l3, smooth=1.0)
    ref3 = dice_loss_ref(p3, l3, smooth=1.0)
    assert jnp.allclose(loss3, ref3, atol=1e-5, rtol=1e-5), (loss3, ref3)

    # Larger case: multiple blocks, 2-way split grid, ragged last block.
    p_big = jax.random.normal(k5, (2, 8, 128, 130), dtype=jnp.float32)
    l_big = (jax.random.uniform(k6, (2, 8, 128, 130)) > 0.5).astype(jnp.float32)
    loss_big = dice_loss(p_big, l_big, smooth=1.0)
    ref_big = dice_loss_ref(p_big, l_big, smooth=1.0)
    assert jnp.allclose(loss_big, ref_big, atol=2e-4, rtol=2e-4), (loss_big, ref_big)

    jax.block_until_ready((loss, loss_bf, loss3, loss_big))
    print("KERNEL_OK")
</pallas_src>

<mosaic_0001>
module attributes {stable_mosaic.version = 11 : i64} {
  func.func @_dice_partials_kernel(%arg0: i32, %arg1: i32, %arg2: memref<16x128xf32, #tpu.memory_space<vmem>>, %arg3: memref<16x128xf32, #tpu.memory_space<vmem>>, %arg4: memref<1x3x8x128xf32, #tpu.memory_space<vmem>>) attributes {dimension_semantics = [#tpu.dimension_semantics<parallel>, #tpu.dimension_semantics<arbitrary>], iteration_bounds = array<i64: 1, 1>, scalar_prefetch = 0 : i64, scratch_operands = 0 : i64, tpu.core_type = #tpu.core_type<tc>, window_params = [{transform_indices = @transform_0, window_bounds = array<i64: 16, 128>}, {transform_indices = @transform_1, window_bounds = array<i64: 16, 128>}, {transform_indices = @transform_2, window_bounds = array<i64: 1, 3, 8, 128>}]} {
    %c0_i32 = arith.constant 0 : i32
    %0 = arith.cmpi eq, %arg1, %c0_i32 : i32
    %1 = arith.extui %0 : i1 to i32
    %c0_i32_0 = arith.constant 0 : i32
    %2 = arith.cmpi ne, %1, %c0_i32_0 : i32
    scf.if %2 {
      %cst_29 = arith.constant 0.000000e+00 : f32
      %35 = vector.broadcast %cst_29 : f32 to vector<1x3x8x128xf32>
      %c0_30 = arith.constant 0 : index
      %c0_31 = arith.constant 0 : index
      %c0_32 = arith.constant 0 : index
      %c0_33 = arith.constant 0 : index
      %36 = vector.load %arg4[%c0_30, %c0_31, %c0_32, %c0_33] : memref<1x3x8x128xf32, #tpu.memory_space<vmem>>, vector<1x3x8x128xf32>
      tpu.vector_store %arg4[%c0_30, %c0_31, %c0_32, %c0_33], %35 {strides = array<i32>} : memref<1x3x8x128xf32, #tpu.memory_space<vmem>>, vector<1x3x8x128xf32>,
    } else {
    }
    %c0 = arith.constant 0 : index
    %c0_1 = arith.constant 0 : index
    %3 = vector.load %arg2[%c0, %c0_1] : memref<16x128xf32, #tpu.memory_space<vmem>>, vector<16x128xf32>
    %4 = arith.negf %3 : vector<16x128xf32>
    %5 = math.exp %4 : vector<16x128xf32>
    %cst = arith.constant 1.000000e+00 : f32
    %6 = vector.broadcast %cst : f32 to vector<16x128xf32>
    %7 = arith.addf %6, %5 : vector<16x128xf32>
    %8 = arith.divf %6, %7 : vector<16x128xf32>
    %c0_2 = arith.constant 0 : index
    %c0_3 = arith.constant 0 : index
    %9 = vector.load %arg3[%c0_2, %c0_3] : memref<16x128xf32, #tpu.memory_space<vmem>>, vector<16x128xf32>
    %c0_4 = arith.constant 0 : index
    %c0_5 = arith.constant 0 : index
    %c0_6 = arith.constant 0 : index
    %c0_7 = arith.constant 0 : index
    %10 = vector.load %arg4[%c0_4, %c0_5, %c0_6, %c0_7] : memref<1x3x8x128xf32, #tpu.memory_space<vmem>>, vector<1x1x8x128xf32>
    %11 = vector.shape_cast %10 : vector<1x1x8x128xf32> to vector<8x128xf32>
    %12 = arith.mulf %8, %9 : vector<16x128xf32>
    %13 = vector.shape_cast %12 : vector<16x128xf32> to vector<2x8x128xf32>
    %cst_8 = arith.constant dense<0.000000e+00> : vector<8x128xf32>
    %14 = vector.multi_reduction <add>, %13, %cst_8 [0] : vector<2x8x128xf32> to vector<8x128xf32>
    %15 = arith.addf %11, %14 : vector<8x128xf32>
    %c0_9 = arith.constant 0 : index
    %c0_10 = arith.constant 0 : index
    %c0_11 = arith.constant 0 : index
    %c0_12 = arith.constant 0 : index
    %16 = vector.load %arg4[%c0_9, %c0_10, %c0_11, %c0_12] : memref<1x3x8x128xf32, #tpu.memory_space<vmem>>, vector<1x1x8x128xf32>
    %17 = vector.shape_cast %16 : vector<1x1x8x128xf32> to vector<8x128xf32>
    %18 = vector.shape_cast %15 : vector<8x128xf32> to vector<1x1x8x128xf32>
    tpu.vector_store %arg4[%c0_9, %c0_10, %c0_11, %c0_12], %18 {strides = array<i32>} : memref<1x3x8x128xf32, #tpu.memory_space<vmem>>, vector<1x1x8x128xf32>,
    %c0_13 = arith.constant 0 : index
    %c1 = arith.constant 1 : index
    %c0_14 = arith.constant 0 : index
    %c0_15 = arith.constant 0 : index
    %19 = vector.load %arg4[%c0_13, %c1, %c0_14, %c0_15] : memref<1x3x8x128xf32, #tpu.memory_space<vmem>>, vector<1x1x8x128xf32>
    %20 = vector.shape_cast %19 : vector<1x1x8x128xf32> to vector<8x128xf32>
    %21 = vector.shape_cast %8 : vector<16x128xf32> to vector<2x8x128xf32>
    %cst_16 = arith.constant dense<0.000000e+00> : vector<8x128xf32>
    %22 = vector.multi_reduction <add>, %21, %cst_16 [0] : vector<2x8x128xf32> to vector<8x128xf32>
    %23 = arith.addf %20, %22 : vector<8x128xf32>
    %c0_17 = arith.constant 0 : index
    %c1_18 = arith.constant 1 : index
    %c0_19 = arith.constant 0 : index
    %c0_20 = arith.constant 0 : index
    %24 = vector.load %arg4[%c0_17, %c1_18, %c0_19, %c0_20] : memref<1x3x8x128xf32, #tpu.memory_space<vmem>>, vector<1x1x8x128xf32>
    %25 = vector.shape_cast %24 : vector<1x1x8x128xf32> to vector<8x128xf32>
    %26 = vector.shape_cast %23 : vector<8x128xf32> to vector<1x1x8x128xf32>
    tpu.vector_store %arg4[%c0_17, %c1_18, %c0_19, %c0_20], %26 {strides = array<i32>} : memref<1x3x8x128xf32, #tpu.memory_space<vmem>>, vector<1x1x8x128xf32>,
    %c0_21 = arith.constant 0 : index
    %c2 = arith.constant 2 : index
    %c0_22 = arith.constant 0 : index
    %c0_23 = arith.constant 0 : index
    %27 = vector.load %arg4[%c0_21, %c2, %c0_22, %c0_23] : memref<1x3x8x128xf32, #tpu.memory_space<vmem>>, vector<1x1x8x128xf32>
    %28 = vector.shape_cast %27 : vector<1x1x8x128xf32> to vector<8x128xf32>
    %29 = vector.shape_cast %9 : vector<16x128xf32> to vector<2x8x128xf32>
    %cst_24 = arith.constant dense<0.000000e+00> : vector<8x128xf32>
    %30 = vector.multi_reduction <add>, %29, %cst_24 [0] : vector<2x8x128xf32> to vector<8x128xf32>
    %31 = arith.addf %28, %30 : vector<8x128xf32>
    %c0_25 = arith.constant 0 : index
    %c2_26 = arith.constant 2 : index
    %c0_27 = arith.constant 0 : index
    %c0_28 = arith.constant 0 : index
    %32 = vector.load %arg4[%c0_25, %c2_26, %c0_27, %c0_28] : memref<1x3x8x128xf32, #tpu.memory_space<vmem>>, vector<1x1x8x128xf32>
    %33 = vector.shape_cast %32 : vector<1x1x8x128xf32> to vector<8x128xf32>
    %34 = vector.shape_cast %31 : vector<8x128xf32> to vector<1x1x8x128xf32>
    tpu.vector_store %arg4[%c0_25, %c2_26, %c0_27, %c0_28], %34 {strides = array<i32>} : memref<1x3x8x128xf32, #tpu.memory_space<vmem>>, vector<1x1x8x128xf32>,
    return
  }
  func.func @transform_0(%arg0: i32, %arg1: i32) -> (i32, i32) {
    %c1_i32 = arith.constant 1 : i32
    %0 = arith.muli %arg0, %c1_i32 : i32
    %1 = arith.addi %0, %arg1 : i32
    %c0_i32 = arith.constant 0 : i32
    %2 = arith.minsi %1, %c0_i32 : i32
    %c0_i32_0 = arith.constant 0 : i32
    %c0_i32_1 = arith.constant 0 : i32
    return %2, %c0_i32_0 : i32, i32
  }
  func.func @transform_1(%arg0: i32, %arg1: i32) -> (i32, i32) {
    %c1_i32 = arith.constant 1 : i32
    %0 = arith.muli %arg0, %c1_i32 : i32
    %1 = arith.addi %0, %arg1 : i32
    %c0_i32 = arith.constant 0 : i32
    %2 = arith.minsi %1, %c0_i32 : i32
    %c0_i32_0 = arith.constant 0 : i32
    %c0_i32_1 = arith.constant 0 : i32
    return %2, %c0_i32_0 : i32, i32
  }
  func.func @transform_2(%arg0: i32, %arg1: i32) -> (i32, i32, i32, i32) {
    %c0_i32 = arith.constant 0 : i32
    %c0_i32_0 = arith.constant 0 : i32
    %c0_i32_1 = arith.constant 0 : i32
    %c0_i32_2 = arith.constant 0 : i32
    return %arg0, %c0_i32, %c0_i32_0, %c0_i32_1 : i32, i32, i32, i32
  }
}

</mosaic_0001>

<llo_original>
// kernel: tpu_custom_call.1
$region0: #{tpu_custom_call.1}
  #allocation0 [shape = 'u32[]', space=smem, size = 0x4, offset = 0x4, fixed_abs, tag = 'smem constant byte address 0x4 - core index']
  #allocation1 [shape = 'u32[72,128]{1,0:T(1,128)}', space=vmem, size = 0x9000, scoped, tag = 'internal scratch']
  %s0 = inlined_call_operand.hbm [shape: f32[16,128], index: 0, kind: input, shape index: {}]
  %s1 = inlined_call_operand.hbm [shape: f32[16,128], index: 1, kind: input, shape index: {}]
  %s2 = inlined_call_operand.hbm [shape: f32[1,3,8,128], index: 2, kind: output, shape index: {}]
  %s3 = sld [smem:[#allocation0]]
  $region30: #{tpu_custom_call.1} parent=0
    _
  %s5 = ssub.s32 1, %s3
  %s6 = scalar_select 0, %s5, %s3
  $region1: #{tpu_custom_call.1} parent=0
    #allocation2 [shape = 'u8[8192]{0}', space=vmem, size = 0x2000, scoped, tag = 'input window, operand 0, single buffered']
    #allocation3 [shape = 's32[1]{0}', space=sflag, size = 0x4, scoped, tag = 'scoped memory for tpu_custom_call.1']
    #allocation4 [shape = 's32[1]{0}', space=sflag, size = 0x4, scoped, tag = 'scoped memory for tpu_custom_call.1']
    #allocation5 [shape = 'u8[8192]{0}', space=vmem, size = 0x2000, scoped, tag = 'input window, operand 1, single buffered']
    #allocation6 [shape = 's32[1]{0}', space=sflag, size = 0x4, scoped, tag = 'scoped memory for tpu_custom_call.1']
    #allocation7 [shape = 'u8[12288]{0}', space=vmem, size = 0x3000, scoped, tag = 'output window, operand 0, single buffered']
    %7 = vsyncpa [#allocation3], 0
    %8 = vsyncpa [#allocation6], 0
    %9 = vsyncpa [#allocation4], 0
    // Predicated region
    $region2: #{tpu_custom_call.1} parent=1 // pred_check
      _
    $region3: #{tpu_custom_call.1} parent=1 // pred_check_branch
      %11 = sbr.rel (0) target = $region5
    $region4: #{tpu_custom_call.1} parent=1 // pred_region
      %s12 = sadd.s32 0, 0
      %p13 = scmp.lt.s32.totalorder %s12, 0
      %s14 = scalar_select %p13, %s12, 0
      %s15 = smul.u32 2, %s14
      %17 = vsyncadd [#allocation3], 0
      %s18 = smul.addr %s15, 8
      %s19 = scalar_lea.hbm %s0, %s18
      %s20 = sshll.u32 %s19, 4
      %s21 = int_to_ptr.hbm [resolvable:$true] %s20
      %s22 = sshll.u32 [#allocation2], 4
      %s23 = int_to_ptr.vmem [resolvable:$true] %s22
      %28 = dma.hbm_to_vmem [thread:$0]  %s21, 256, %s23, [#allocation3], 128, 128, 8
    $region5: #{tpu_custom_call.1} parent=1 // pred_fallthru
      _
    // Predicated region
    $region6: #{tpu_custom_call.1} parent=1 // pred_check
      _
    $region7: #{tpu_custom_call.1} parent=1 // pred_check_branch
      %30 = sbr.rel (0) target = $region9
    $region8: #{tpu_custom_call.1} parent=1 // pred_region
      %s31 = sadd.s32 0, 0
      %p32 = scmp.lt.s32.totalorder %s31, 0
      %s33 = scalar_select %p32, %s31, 0
      %s34 = smul.u32 2, %s33
      %36 = vsyncadd [#allocation6], 0
      %s37 = smul.addr %s34, 8
      %s38 = scalar_lea.hbm %s1, %s37
      %s39 = sshll.u32 %s38, 4
      %s40 = int_to_ptr.hbm [resolvable:$true] %s39
      %s41 = sshll.u32 [#allocation5], 4
      %s42 = int_to_ptr.vmem [resolvable:$true] %s41
      %47 = dma.hbm_to_vmem [thread:$0]  %s40, 256, %s42, [#allocation6], 128, 128, 8
    $region9: #{tpu_custom_call.1} parent=1 // pred_fallthru
      _
    // Predicated region
    $region10: #{tpu_custom_call.1} parent=1 // pred_check
      _
    $region11: #{tpu_custom_call.1} parent=1 // pred_check_branch
      %49 = sbr.rel (0) target = $region13
    $region12: #{tpu_custom_call.1} parent=1 // pred_region
      %51 = dma.done [#allocation3], 256
    $region13: #{tpu_custom_call.1} parent=1 // pred_fallthru
      _
    // Predicated region
    $region14: #{tpu_custom_call.1} parent=1 // pred_check
      _
    $region15: #{tpu_custom_call.1} parent=1 // pred_check_branch
      %53 = sbr.rel (0) target = $region17
    $region16: #{tpu_custom_call.1} parent=1 // pred_region
      %55 = dma.done [#allocation6], 256
    $region17: #{tpu_custom_call.1} parent=1 // pred_fallthru
      _
    %s56 = sadd.s32 0, 0
    %p57 = scmp.lt.s32.totalorder %s56, 0
    %s58 = scalar_select %p57, %s56, 0
    %s59 = smul.u32 2, %s58
    %s60 = sadd.s32 0, 0
    %p61 = scmp.lt.s32.totalorder %s60, 0
    %s62 = scalar_select %p61, %s60, 0
    %s63 = smul.u32 2, %s62
    %p64 = scmp.eq.s32.totalorder 0, 0
    // Predicated region
    $region18: #{tpu_custom_call.1} parent=1 // pred_check
      %p65 = pneg %p64
    $region19: #{tpu_custom_call.1} parent=1 // pred_check_branch
      %67 = sbr.rel (%p65) target = $region21
    $region20: #{tpu_custom_call.1} parent=1 // pred_region
      %68 = vst [vmem:[#allocation7] sm:$0xff] 0.0
      %69 = vst [vmem:[#allocation7 + $0x8] sm:$0xff] 0.0
      %70 = vst [vmem:[#allocation7 + $0x10] sm:$0xff] 0.0
    $region21: #{tpu_custom_call.1} parent=1 // pred_fallthru
      _
    %v71 = vld [vmem:[#allocation2] sm:$0xff]
    %v72 = vld [vmem:[#allocation2 + $0x8] sm:$0xff]
    %v73 = vxor.u32 %v71, 2147483648
    %v74 = vxor.u32 %v72, 2147483648
    %v75 = vmul.f32 %v73, 1.442695
    %v76 = vpow.pop %v75
    %v77 = vmul.f32 %v74, 1.442695
    %v78 = vpow.pop %v77
    %v79 = vadd.f32 %v76, 1.0
    %v80 = vadd.f32 %v78, 1.0
    %v81 = vrcp.pop %v79
    %v82 = vmul.f32 %v79, %v81
    %v83 = vsub.f32 1.0, %v82
    %v84 = vmul.f32 %v81, %v83
    %v85 = vadd.f32 %v81, %v84
    %vm86 = vweird.f32 %v79
    %vm87 = vweird.f32 %v81
    %vm88 = vmor %vm86, %vm87
    %v89 = vsel %vm88, %v81, %v85
    %v90 = vand.u32 2147483647, %v79
    %vm91 = vcmp.eq.f32.partialorder %v90, 8.507059e+37
    %v92 = vand.u32 %v79, 2147483648
    %v93 = vor.u32 1.1754944e-38, %v92
    %v94 = vsel %vm91, %v93, %v89
    %v95 = vmul.f32 1.0, %v94
    %v96 = vrcp.pop %v80
    %v97 = vmul.f32 %v80, %v96
    %v98 = vsub.f32 1.0, %v97
    %v99 = vmul.f32 %v96, %v98
    %v100 = vadd.f32 %v96, %v99
    %vm101 = vweird.f32 %v80
    %vm102 = vweird.f32 %v96
    %vm103 = vmor %vm101, %vm102
    %v104 = vsel %vm103, %v96, %v100
    %v105 = vand.u32 2147483647, %v80
    %vm106 = vcmp.eq.f32.partialorder %v105, 8.507059e+37
    %v107 = vand.u32 %v80, 2147483648
    %v108 = vor.u32 1.1754944e-38, %v107
    %v109 = vsel %vm106, %v108, %v104
    %v110 = vmul.f32 1.0, %v109
    %v111 = vld [vmem:[#allocation5] sm:$0xff]
    %v112 = vld [vmem:[#allocation5 + $0x8] sm:$0xff]
    %v113 = vld [vmem:[#allocation7] sm:$0xff]
    %v114 = vmul.f32 %v95, %v111
    %v115 = vmul.f32 %v110, %v112
    %v116 = vadd.f32 %v114, %v115
    %v117 = vadd.f32 %v113, %v116
    %118 = vst [vmem:[#allocation7] sm:$0xff] %v117
    %s119 = scalar_lea.vmem [#allocation7], 8
    %v120 = vld [vmem:[%s119] sm:$0xff]
    %v121 = vadd.f32 %v95, %v110
    %v122 = vadd.f32 %v120, %v121
    %123 = vst [vmem:[%s119] sm:$0xff] %v122
    %s124 = scalar_lea.vmem [#allocation7], 16
    %v125 = vld [vmem:[%s124] sm:$0xff]
    %v126 = vadd.f32 %v111, %v112
    %v127 = vadd.f32 %v125, %v126
    %128 = vst [vmem:[%s124] sm:$0xff] %v127
    // Predicated region
    $region22: #{tpu_custom_call.1} parent=1 // pred_check
      _
    $region23: #{tpu_custom_call.1} parent=1 // pred_check_branch
      %130 = sbr.rel (0) target = $region25
    $region24: #{tpu_custom_call.1} parent=1 // pred_region
      %132 = vsyncadd [#allocation4], 0
      %s133 = sshll.u32 [#allocation7], 4
      %s134 = int_to_ptr.vmem [resolvable:$true] %s133
      %s135 = sshll.u32 %s2, 4
      %s136 = int_to_ptr.hbm [resolvable:$true] %s135
      %141 = dma.vmem_to_hbm [thread:$0]  %s134, 384, %s136, [#allocation4], 128, 128, 8
    $region25: #{tpu_custom_call.1} parent=1 // pred_fallthru
      _
    // Predicated region
    $region26: #{tpu_custom_call.1} parent=1 // pred_check
      _
    $region27: #{tpu_custom_call.1} parent=1 // pred_check_branch
      %143 = sbr.rel (0) target = $region29
    $region28: #{tpu_custom_call.1} parent=1 // pred_region
      %145 = dma.done [#allocation4], 384
    $region29: #{tpu_custom_call.1} parent=1 // pred_fallthru
      _
    %146 = vsyncpa [#allocation3], 1
    %147 = vsyncpa [#allocation6], 1
    %148 = vsyncpa [#allocation4], 1

</llo_original>
